<compile_context>
chip_gen: v7x
topology: tpu7x:2x2x1
jax: 0.10.0
libtpu: 0.0.40
codegen_flags: <defaults>
</compile_context>

<pallas_src>
import dataclasses
import math

import jax
import jax.numpy as jnp
from jax.experimental import pallas as pl
from jax.experimental.pallas import tpu as pltpu


# ----------------------------------------------------------------------------
# Small helpers
# ----------------------------------------------------------------------------
def _round_up(x, m):
    return ((x + m - 1) // m) * m


def _cdiv(a, b):
    return (a + b - 1) // b


def _largest_aligned_divisor(total, align, below):
    """Largest multiple of `align` that divides `total` and is < `below`.
    Returns `below` unchanged if none exists."""
    for cand in range(below - align, align - 1, -align):
        if total % cand == 0:
            return cand
    return below


def _pick_tile_k(K, default):
    """tile_k: prefer a multiple-of-128 divisor of K (avoids zero-padding x's
    K axis, i.e. avoids a full HBM copy of x), else the default (K padded)."""
    k128 = _round_up(K, 128)
    if k128 <= default:
        return k128
    for cand in range(default, 255, -128):
        if K % cand == 0:
            return cand
    return default


def _pick_tile_m(M, default, sublane):
    """tile_m: prefer a sublane-aligned divisor of M (no M padding / no copy of
    x), else fall back to `default` (M padded up to a tile multiple)."""
    m_aligned = _round_up(M, sublane)
    if m_aligned <= default:
        return m_aligned
    lo = max(sublane, default // 4)
    for cand in range(default, lo - 1, -sublane):
        if M % cand == 0:
            return cand
    return default


def _vmem_capacity_bytes():
    """Physical VMEM of the current chip (v5e/v6e: 128 MiB, v7x: 64 MiB)."""
    try:
        info = pltpu.get_tpu_info()
        return int(getattr(info, "vmem_capacity_bytes", 64 << 20))
    except Exception:
        return 64 << 20   # conservative (v7x-sized) fallback


# ----------------------------------------------------------------------------
# Kernels
# ----------------------------------------------------------------------------
def _linear_bias_kernel(x_ref, w_ref, b_ref, o_ref, acc_ref):
    # x_ref: (tm, tk)  w_ref: (tk, tn)  b_ref: (1, tn) f32  o_ref: (tm, tn)
    k = pl.program_id(2)

    @pl.when(k == 0)
    def _():
        acc_ref[...] = jnp.zeros_like(acc_ref)

    acc_ref[...] += jnp.dot(x_ref[...], w_ref[...],
                            preferred_element_type=jnp.float32)

    @pl.when(k == pl.num_programs(2) - 1)
    def _():
        # Bias added in f32; single cast at the final store.
        o_ref[...] = (acc_ref[...] + b_ref[...]).astype(o_ref.dtype)


def _linear_nobias_kernel(x_ref, w_ref, o_ref, acc_ref):
    k = pl.program_id(2)

    @pl.when(k == 0)
    def _():
        acc_ref[...] = jnp.zeros_like(acc_ref)

    acc_ref[...] += jnp.dot(x_ref[...], w_ref[...],
                            preferred_element_type=jnp.float32)

    @pl.when(k == pl.num_programs(2) - 1)
    def _():
        o_ref[...] = acc_ref[...].astype(o_ref.dtype)


# ----------------------------------------------------------------------------
# One-time (hoisted) weight preparation
# ----------------------------------------------------------------------------
@dataclasses.dataclass
class PreparedLinear:
    w_t: jax.Array          # (k_pad, n_pad), compute dtype, K on sublanes / N on lanes
    b2d: object             # (1, n_pad) f32 or None
    n: int
    k: int
    n_pad: int
    k_pad: int
    tile_n: int
    tile_k: int
    compute_dtype: object   # numpy dtype


def prepare_linear_params(weight, bias=None, *, compute_dtype=None,
                          tile_n=None, tile_k=None):
    """One-time layout transform for the weight: transpose to (K, N), cast to
    the compute dtype, zero-pad K/N to tile multiples.  Hoist this out of the
    forward path — it costs a full HBM pass over W each time it runs."""
    N, K = weight.shape
    if compute_dtype is None:
        # MXU is bf16-native on v5e/v6e/v7x: feed bf16 by default for f32
        # weights (accumulation stays f32).  Explicit f32 requests are honored.
        compute_dtype = (jnp.bfloat16
                         if jnp.dtype(weight.dtype) == jnp.dtype(jnp.float32)
                         else weight.dtype)
    cdt = jnp.dtype(compute_dtype)
    itemsize = cdt.itemsize

    if tile_n is None:
        tn_default = 1024 if itemsize <= 2 else 512
        tile_n = min(tn_default, _round_up(N, 128))
    else:
        tile_n = _round_up(tile_n, 128)
    if tile_k is None:
        tk_default = 1024 if itemsize <= 2 else 512
        tile_k = _pick_tile_k(K, tk_default)
    else:
        tile_k = _round_up(tile_k, 128)

    n_pad = _round_up(N, tile_n)
    k_pad = _round_up(K, tile_k)

    w_t = weight.T.astype(cdt)               # (K, N): lane-dense in N for the MXU
    if (k_pad, n_pad) != (K, N):
        w_t = jnp.pad(w_t, ((0, k_pad - K), (0, n_pad - N)))

    b2d = None
    if bias is not None:
        b2d = bias.astype(jnp.float32).reshape(1, N)
        if n_pad != N:
            b2d = jnp.pad(b2d, ((0, 0), (0, n_pad - N)))

    return PreparedLinear(w_t=w_t, b2d=b2d, n=N, k=K, n_pad=n_pad, k_pad=k_pad,
                          tile_n=tile_n, tile_k=tile_k, compute_dtype=cdt)


# ----------------------------------------------------------------------------
# Forward
# ----------------------------------------------------------------------------
def lazy_linear(x, weight=None, bias=None, *, prepared=None, compute_dtype=None,
                tile_m=None, tile_n=None, tile_k=None, force_pallas=False):
    """Pallas implementation of F.linear(x, weight, bias).

    Either pass raw `weight` (N, K) [+ bias (N,)], or a `prepared=`
    PreparedLinear (from prepare_linear_params) to keep the weight layout
    transform out of the hot path.
    """
    if prepared is None:
        assert weight is not None
        # NOTE: re-preparing every call does an extra HBM pass over W; callers
        # in a steady state should prepare once and pass `prepared=`.
        prepared = prepare_linear_params(weight, bias, compute_dtype=compute_dtype,
                                         tile_n=tile_n, tile_k=tile_k)
    p = prepared

    *lead, K = x.shape
    assert K == p.k, f"in_features mismatch: {K} vs {p.k}"
    M = int(math.prod(lead)) if lead else 1
    N = p.n
    out_dtype = x.dtype

    x2d = x.reshape(M, K)
    if x2d.dtype != p.compute_dtype:
        x2d = x2d.astype(p.compute_dtype)

    # Skinny-M (decode-like) / tiny-problem routing: the MXU runs at a few %
    # utilization and per-grid-step overhead dominates; plain XLA dot is faster.
    if not force_pallas and (M <= 64 or M * N * K < (1 << 20)):
        y = jnp.dot(x2d, p.w_t[:K, :N], preferred_element_type=jnp.float32)
        if p.b2d is not None:
            y = y + p.b2d[:, :N]
        return y.astype(out_dtype).reshape(*lead, N)

    in_itemsize = p.compute_dtype.itemsize
    out_itemsize = jnp.dtype(out_dtype).itemsize
    sublane = 8 if in_itemsize >= 4 else 32 // in_itemsize

    tile_n_ = p.tile_n
    tile_k_ = p.tile_k
    n_pad, k_pad = p.n_pad, p.k_pad

    vmem_cap = _vmem_capacity_bytes()
    budget = int(0.40 * vmem_cap)    # generation-aware: ~25 MiB on v7x, ~51 MiB on v5e/v6e
    bias_bytes = 2 * tile_n_ * 4 if p.b2d is not None else 0

    if tile_m is None:
        tm_default = 1024 if in_itemsize <= 2 else 512
        # Largest tile_m whose double-buffered working set fits the VMEM budget.
        per_tm = 2 * tile_k_ * in_itemsize + tile_n_ * (2 * out_itemsize + 4)
        fixed = 2 * tile_k_ * tile_n_ * in_itemsize + bias_bytes
        tm_budget = max(sublane, ((budget - fixed) // per_tm) // sublane * sublane)
        tile_m = _pick_tile_m(M, min(tm_default, tm_budget), sublane)

    grid_m = _cdiv(_round_up(M, tile_m), tile_m)
    grid_n = n_pad // tile_n_

    # Megacore (v7x: 2 TensorCores): guarantee >= 2 "parallel" grid steps so the
    # grid can be sharded across both cores instead of serializing on one.
    if grid_m * grid_n == 1:
        if tile_n_ > 128:
            tile_n_ = _largest_aligned_divisor(n_pad, 128, tile_n_)
            grid_n = n_pad // tile_n_
        if grid_m * grid_n == 1 and tile_m >= 4 * sublane:
            tile_m = _largest_aligned_divisor(_round_up(M, tile_m), sublane, tile_m)
            grid_m = _cdiv(_round_up(M, tile_m), tile_m)

    m_pad = _round_up(M, tile_m)
    pad_m = m_pad - M
    pad_k = k_pad - K
    if pad_m or pad_k:
        # Only K zero-padding is required for exactness; tile_m/tile_k are
        # chosen to divide M/K whenever possible, so this copy of x is rare.
        x2d = jnp.pad(x2d, ((0, pad_m), (0, pad_k)))

    grid_k = k_pad // tile_k_
    grid = (grid_m, grid_n, grid_k)

    x_spec = pl.BlockSpec((tile_m, tile_k_), lambda i, j, k: (i, k))
    w_spec = pl.BlockSpec((tile_k_, tile_n_), lambda i, j, k: (k, j))
    o_spec = pl.BlockSpec((tile_m, tile_n_), lambda i, j, k: (i, j))

    working = (2 * (tile_m * tile_k_ + tile_k_ * tile_n_) * in_itemsize
               + 2 * tile_m * tile_n_ * out_itemsize
               + tile_m * tile_n_ * 4
               + bias_bytes)
    # Explicit scoped-VMEM limit: v5e's default is only 16 MiB; cap well under
    # v7x's 64 MiB physical VMEM.
    vmem_limit = int(min(0.9 * vmem_cap, max(32 << 20, 2 * working)))
    compiler_params = pltpu.CompilerParams(
        dimension_semantics=("parallel", "parallel", "arbitrary"),
        vmem_limit_bytes=vmem_limit)

    # Actual streamed traffic: x is re-read once per N block, W once per M
    # block, the output is written once.
    cost = pl.CostEstimate(
        flops=2 * m_pad * n_pad * k_pad,
        transcendentals=0,
        bytes_accessed=(m_pad * k_pad * in_itemsize * grid_n
                        + k_pad * n_pad * in_itemsize * grid_m
                        + m_pad * n_pad * out_itemsize
                        + (n_pad * 4 * grid_m if p.b2d is not None else 0)),
    )

    out_shape = jax.ShapeDtypeStruct((m_pad, n_pad), out_dtype)
    scratch = [pltpu.VMEM((tile_m, tile_n_), jnp.float32)]

    if p.b2d is not None:
        b_spec = pl.BlockSpec((1, tile_n_), lambda i, j, k: (0, j))
        out = pl.pallas_call(
            _linear_bias_kernel,
            out_shape=out_shape,
            grid_spec=pltpu.PrefetchScalarGridSpec(
                num_scalar_prefetch=0, grid=grid,
                in_specs=[x_spec, w_spec, b_spec],
                out_specs=o_spec, scratch_shapes=scratch),
            compiler_params=compiler_params,
            cost_estimate=cost,
        )(x2d, p.w_t, p.b2d)
    else:
        out = pl.pallas_call(
            _linear_nobias_kernel,
            out_shape=out_shape,
            grid_spec=pltpu.PrefetchScalarGridSpec(
                num_scalar_prefetch=0, grid=grid,
                in_specs=[x_spec, w_spec],
                out_specs=o_spec, scratch_shapes=scratch),
            compiler_params=compiler_params,
            cost_estimate=cost,
        )(x2d, p.w_t)

    if m_pad != M or n_pad != N:
        out = out[:M, :N]
    return out.reshape(*lead, N)


# ----------------------------------------------------------------------------
# Parameter init (matches LazyLinear.reset_parameters) and lazy module wrapper
# ----------------------------------------------------------------------------
def init_lazy_linear_params(key, in_features, out_features, bias=True,
                            dtype=jnp.float32):
    """kaiming_uniform_(weight, a=sqrt(5)) -> U(-1/sqrt(fan_in), 1/sqrt(fan_in));
    bias ~ U(-1/sqrt(fan_in), 1/sqrt(fan_in))."""
    kw, kb = jax.random.split(key)
    bound = 1.0 / math.sqrt(in_features)
    weight = jax.random.uniform(kw, (out_features, in_features), dtype,
                                minval=-bound, maxval=bound)
    b = None
    if bias:
        b = jax.random.uniform(kb, (out_features,), dtype,
                               minval=-bound, maxval=bound)
    return weight, b


class LazyLinearPallas:
    """JAX/Pallas analogue of the PyTorch LazyLinear module (forward only).

    in_features=None is inferred from x.shape[-1] at the first call.  The
    weight layout transform (transpose / cast / pad) is performed once at
    materialization time and cached — it is NOT redone per forward call.
    """
    # TODO(synk): LazyLoadModule's load_state_dict pre-hook (lazy parameter
    # re-registration during de-serialization) has no Pallas equivalent.

    def __init__(self, in_features, out_features, bias=True, *, key=None,
                 dtype=jnp.float32, compute_dtype=None):
        self.in_features = in_features
        self.out_features = out_features
        self.use_bias = bias
        self.param_dtype = dtype
        self.compute_dtype = compute_dtype
        self._key = key if key is not None else jax.random.PRNGKey(0)
        self.weight = None
        self.bias = None
        self._prepared = None
        if in_features is not None:
            self._materialize(in_features)

    def _materialize(self, in_features):
        self.in_features = in_features
        self.weight, self.bias = init_lazy_linear_params(
            self._key, in_features, self.out_features, self.use_bias,
            self.param_dtype)
        self._prepared = prepare_linear_params(
            self.weight, self.bias, compute_dtype=self.compute_dtype)

    def __call__(self, x, *, force_pallas=False):
        if self.weight is None:
            self._materialize(x.shape[-1])        # lazy in_features inference
        return lazy_linear(x, prepared=self._prepared, force_pallas=force_pallas)


# ----------------------------------------------------------------------------
# Self-test
# ----------------------------------------------------------------------------
if __name__ == "__main__":
    key = jax.random.PRNGKey(0)
    k_x, k_p, k_x2, k_p2 = jax.random.split(key, 4)

    # Case 1: small module-consistent shape (batch=2, seq=8, hidden=32 -> 16),
    # default compute path (bf16 MXU feed, f32 accumulation), bias kernel.
    batch, seq, hidden, out_features = 2, 8, 32, 16
    x = jax.random.normal(k_x, (batch, seq, hidden), dtype=jnp.float32)
    weight, bias = init_lazy_linear_params(k_p, hidden, out_features, bias=True)
    prep = prepare_linear_params(weight, bias)        # hoisted one-time weight prep
    y = jax.block_until_ready(lazy_linear(x, prepared=prep, force_pallas=True))
    y_ref = x @ weight.T + bias
    assert y.shape == (batch, seq, out_features)
    assert jnp.allclose(y, y_ref, atol=3e-2, rtol=3e-2), \
        float(jnp.max(jnp.abs(y - y_ref)))

    # Same shape through the lazy module wrapper (in_features inferred lazily;
    # tiny M routes to the XLA fallback by design).
    mod = LazyLinearPallas(None, out_features, bias=True, key=k_p)
    y_mod = jax.block_until_ready(mod(x))
    y_mod_ref = x @ mod.weight.T + mod.bias
    assert y_mod.shape == (batch, seq, out_features)
    assert jnp.allclose(y_mod, y_mod_ref, atol=3e-2, rtol=3e-2)

    # Case 2: non-divisible multi-tile shape in full f32.  Exercises the K
    # accumulator over 2 K-steps, K zero-padding, divisor-aware tile_m and the
    # megacore tile_n split, with the bias-free kernel.
    M2, K2, N2 = 300, 640, 200
    x2 = jax.random.normal(k_x2, (M2, K2), dtype=jnp.float32)
    w2, _ = init_lazy_linear_params(k_p2, K2, N2, bias=False)
    prep2 = prepare_linear_params(w2, None, compute_dtype=jnp.float32)
    y2 = jax.block_until_ready(lazy_linear(x2, prepared=prep2, force_pallas=True))
    y2_ref = jnp.dot(x2, w2.T, precision=jax.lax.Precision.HIGHEST)
    assert y2.shape == (M2, N2)
    assert jnp.allclose(y2, y2_ref, atol=2e-4, rtol=2e-4), \
        float(jnp.max(jnp.abs(y2 - y2_ref)))

    print("KERNEL_OK")
</pallas_src>

<mosaic_0001>
module attributes {stable_mosaic.version = 11 : i64} {
  func.func @_linear_bias_kernel(%arg0: i32, %arg1: i32, %arg2: i32, %arg3: memref<16x128xbf16, #tpu.memory_space<vmem>>, %arg4: memref<128x128xbf16, #tpu.memory_space<vmem>>, %arg5: memref<1x128xf32, #tpu.memory_space<vmem>>, %arg6: memref<16x128xf32, #tpu.memory_space<vmem>>, %arg7: memref<16x128xf32, #tpu.memory_space<vmem>>) attributes {dimension_semantics = [#tpu.dimension_semantics<parallel>, #tpu.dimension_semantics<parallel>, #tpu.dimension_semantics<arbitrary>], iteration_bounds = array<i64: 1, 1, 1>, scalar_prefetch = 0 : i64, scratch_operands = 1 : i64, tpu.core_type = #tpu.core_type<tc>, window_params = [{transform_indices = @transform_0, window_bounds = array<i64: 16, 128>}, {transform_indices = @transform_1, window_bounds = array<i64: 128, 128>}, {transform_indices = @transform_2, window_bounds = array<i64: 1, 128>}, {transform_indices = @transform_3, window_bounds = array<i64: 16, 128>}]} {
    %c0_i32 = arith.constant 0 : i32
    %0 = arith.cmpi eq, %arg2, %c0_i32 : i32
    %1 = arith.extui %0 : i1 to i32
    %c0_i32_0 = arith.constant 0 : i32
    %2 = arith.cmpi ne, %1, %c0_i32_0 : i32
    scf.if %2 {
      %cst_10 = arith.constant 0.000000e+00 : f32
      %12 = vector.broadcast %cst_10 : f32 to vector<16x128xf32>
      %c0_11 = arith.constant 0 : index
      %c0_12 = arith.constant 0 : index
      %13 = vector.load %arg7[%c0_11, %c0_12] : memref<16x128xf32, #tpu.memory_space<vmem>>, vector<16x128xf32>
      tpu.vector_store %arg7[%c0_11, %c0_12], %12 {strides = array<i32>} : memref<16x128xf32, #tpu.memory_space<vmem>>, vector<16x128xf32>,
    } else {
    }
    %c0 = arith.constant 0 : index
    %c0_1 = arith.constant 0 : index
    %3 = vector.load %arg7[%c0, %c0_1] : memref<16x128xf32, #tpu.memory_space<vmem>>, vector<16x128xf32>
    %c0_2 = arith.constant 0 : index
    %c0_3 = arith.constant 0 : index
    %4 = vector.load %arg3[%c0_2, %c0_3] : memref<16x128xbf16, #tpu.memory_space<vmem>>, vector<16x128xbf16>
    %c0_4 = arith.constant 0 : index
    %c0_5 = arith.constant 0 : index
    %5 = vector.load %arg4[%c0_4, %c0_5] : memref<128x128xbf16, #tpu.memory_space<vmem>>, vector<128x128xbf16>
    %cst = arith.constant dense<0.000000e+00> : vector<16x128xf32>
    %6 = tpu.matmul %4, %5, %cst {dimension_numbers = #tpu.dot_dimension_numbers<[1], [0], [0], [1], [0, 0, 1, 1], [], []>} : vector<16x128xbf16>, vector<128x128xbf16>, vector<16x128xf32> -> vector<16x128xf32>
    %7 = arith.addf %3, %6 : vector<16x128xf32>
    %c0_6 = arith.constant 0 : index
    %c0_7 = arith.constant 0 : index
    %8 = vector.load %arg7[%c0_6, %c0_7] : memref<16x128xf32, #tpu.memory_space<vmem>>, vector<16x128xf32>
    tpu.vector_store %arg7[%c0_6, %c0_7], %7 {strides = array<i32>} : memref<16x128xf32, #tpu.memory_space<vmem>>, vector<16x128xf32>,
    %c0_i32_8 = arith.constant 0 : i32
    %9 = arith.cmpi eq, %arg2, %c0_i32_8 : i32
    %10 = arith.extui %9 : i1 to i32
    %c0_i32_9 = arith.constant 0 : i32
    %11 = arith.cmpi ne, %10, %c0_i32_9 : i32
    scf.if %11 {
      %c0_10 = arith.constant 0 : index
      %c0_11 = arith.constant 0 : index
      %12 = vector.load %arg7[%c0_10, %c0_11] : memref<16x128xf32, #tpu.memory_space<vmem>>, vector<16x128xf32>
      %c0_12 = arith.constant 0 : index
      %c0_13 = arith.constant 0 : index
      %13 = vector.load %arg5[%c0_12, %c0_13] : memref<1x128xf32, #tpu.memory_space<vmem>>, vector<1x128xf32>
      %14 = vector.broadcast %13 : vector<1x128xf32> to vector<16x128xf32>
      %15 = arith.addf %12, %14 : vector<16x128xf32>
      %c0_14 = arith.constant 0 : index
      %c0_15 = arith.constant 0 : index
      %16 = vector.load %arg6[%c0_14, %c0_15] : memref<16x128xf32, #tpu.memory_space<vmem>>, vector<16x128xf32>
      tpu.vector_store %arg6[%c0_14, %c0_15], %15 {strides = array<i32>} : memref<16x128xf32, #tpu.memory_space<vmem>>, vector<16x128xf32>,
    } else {
    }
    return
  }
  func.func @transform_0(%arg0: i32, %arg1: i32, %arg2: i32) -> (i32, i32) {
    %c0_i32 = arith.constant 0 : i32
    return %arg0, %arg2 : i32, i32
  }
  func.func @transform_1(%arg0: i32, %arg1: i32, %arg2: i32) -> (i32, i32) {
    %c0_i32 = arith.constant 0 : i32
    return %arg2, %arg1 : i32, i32
  }
  func.func @transform_2(%arg0: i32, %arg1: i32, %arg2: i32) -> (i32, i32) {
    %c0_i32 = arith.constant 0 : i32
    %c0_i32_0 = arith.constant 0 : i32
    return %c0_i32, %arg1 : i32, i32
  }
  func.func @transform_3(%arg0: i32, %arg1: i32, %arg2: i32) -> (i32, i32) {
    %c0_i32 = arith.constant 0 : i32
    return %arg0, %arg1 : i32, i32
  }
}

</mosaic_0001>

<llo_original>
// kernel: tpu_custom_call.1
$region0: #{tpu_custom_call.1}
  #allocation0 [shape = 'u32[]', space=smem, size = 0x4, offset = 0x4, fixed_abs, tag = 'smem constant byte address 0x4 - core index']
  #allocation1 [shape = 'u32[144,128]{1,0:T(1,128)}', space=vmem, size = 0x12000, scoped, tag = 'internal scratch']
  #allocation2 [shape = 'f32[16,128]{1,0:T(8,128)}', space=vmem, size = 0x2000, scoped, tag = 'scratch operand']
  %s0 = inlined_call_operand.hbm [shape: bf16[16,128], index: 0, kind: input, shape index: {}]
  %s1 = inlined_call_operand.hbm [shape: bf16[128,128], index: 1, kind: input, shape index: {}]
  %s2 = inlined_call_operand.vmem [shape: f32[1,128], index: 2, kind: input, shape index: {}]
  %s3 = inlined_call_operand.hbm [shape: f32[16,128], index: 3, kind: output, shape index: {}]
  %s4 = sld [smem:[#allocation0]]
  $region38: #{tpu_custom_call.1} parent=0
    _
  %s6 = ssub.s32 1, %s4
  %s7 = scalar_select 0, %s6, %s4
  $region1: #{tpu_custom_call.1} parent=0
    #allocation3 [shape = 'u8[4096]{0}', space=vmem, size = 0x1000, scoped, tag = 'input window, operand 0, single buffered']
    #allocation4 [shape = 's32[1]{0}', space=sflag, size = 0x4, scoped, tag = 'scoped memory for tpu_custom_call.1']
    #allocation5 [shape = 's32[1]{0}', space=sflag, size = 0x4, scoped, tag = 'scoped memory for tpu_custom_call.1']
    #allocation6 [shape = 'u8[32768]{0}', space=vmem, size = 0x8000, scoped, tag = 'input window, operand 1, single buffered']
    #allocation7 [shape = 's32[1]{0}', space=sflag, size = 0x4, scoped, tag = 'scoped memory for tpu_custom_call.1']
    #allocation8 [shape = 'u8[8192]{0}', space=vmem, size = 0x2000, scoped, tag = 'output window, operand 0, single buffered']
    %8 = vsyncpa [#allocation4], 0
    %9 = vsyncpa [#allocation7], 0
    %10 = vsyncpa [#allocation5], 0
    // Predicated region
    $region2: #{tpu_custom_call.1} parent=1 // pred_check
      _
    $region3: #{tpu_custom_call.1} parent=1 // pred_check_branch
      %12 = sbr.rel (0) target = $region5
    $region4: #{tpu_custom_call.1} parent=1 // pred_region
      %s14 = ssub.s32 128, 128
      %15 = vsyncadd [#allocation4], %s14
      %s16 = sshll.u32 [#allocation3], 4
      %s17 = int_to_ptr.vmem [resolvable:$true] %s16
      %22 = dma.hbm_to_vmem [thread:$0]  %s0, 128, %s17, [#allocation4], 64, 64, 4
    $region5: #{tpu_custom_call.1} parent=1 // pred_fallthru
      _
    // Predicated region
    $region6: #{tpu_custom_call.1} parent=1 // pred_check
      _
    $region7: #{tpu_custom_call.1} parent=1 // pred_check_branch
      %24 = sbr.rel (0) target = $region9
    $region8: #{tpu_custom_call.1} parent=1 // pred_region
      %s26 = ssub.s32 1024, 1024
      %27 = vsyncadd [#allocation7], %s26
      %s28 = sshll.u32 [#allocation6], 4
      %s29 = int_to_ptr.vmem [resolvable:$true] %s28
      %34 = dma.hbm_to_vmem [thread:$0]  %s1, 1024, %s29, [#allocation7], 64, 64, 4
    $region9: #{tpu_custom_call.1} parent=1 // pred_fallthru
      _
    // Predicated region
    $region10: #{tpu_custom_call.1} parent=1 // pred_check
      _
    $region11: #{tpu_custom_call.1} parent=1 // pred_check_branch
      %36 = sbr.rel (0) target = $region13
    $region12: #{tpu_custom_call.1} parent=1 // pred_region
      _
    $region13: #{tpu_custom_call.1} parent=1 // pred_fallthru
      _
    // Predicated region
    $region14: #{tpu_custom_call.1} parent=1 // pred_check
      _
    $region15: #{tpu_custom_call.1} parent=1 // pred_check_branch
      %38 = sbr.rel (0) target = $region17
    $region16: #{tpu_custom_call.1} parent=1 // pred_region
      %39 = dma.done [#allocation4], 128
    $region17: #{tpu_custom_call.1} parent=1 // pred_fallthru
      _
    // Predicated region
    $region18: #{tpu_custom_call.1} parent=1 // pred_check
      _
    $region19: #{tpu_custom_call.1} parent=1 // pred_check_branch
      %41 = sbr.rel (0) target = $region21
    $region20: #{tpu_custom_call.1} parent=1 // pred_region
      %42 = dma.done [#allocation7], 1024
    $region21: #{tpu_custom_call.1} parent=1 // pred_fallthru
      _
    %p44 = scmp.eq.s32.totalorder 0, 0
    // Predicated region
    $region22: #{tpu_custom_call.1} parent=1 // pred_check
      %p45 = pneg %p44
    $region23: #{tpu_custom_call.1} parent=1 // pred_check_branch
      %47 = sbr.rel (%p45) target = $region25
    $region24: #{tpu_custom_call.1} parent=1 // pred_region
      %48 = vst [vmem:[#allocation2] sm:$0xff] 0.0
      %49 = vst [vmem:[#allocation2 + $0x8] sm:$0xff] 0.0
    $region25: #{tpu_custom_call.1} parent=1 // pred_fallthru
      _
    %v50 = vld [vmem:[#allocation2] sm:$0xff]
    %v51 = vld [vmem:[#allocation2 + $0x8] sm:$0xff]
    %v52 = vld [vmem:[#allocation3] sm:$0xf]
    %v53 = vld [vmem:[#allocation3 + $0x4] sm:$0xf]
    %v54 = vld [vmem:[#allocation6] sm:$0xf]
    %v55 = vld [vmem:[#allocation6 + $0x4] sm:$0xf]
    %v56 = vld [vmem:[#allocation6 + $0x8] sm:$0xf]
    %v57 = vld [vmem:[#allocation6 + $0xc] sm:$0xf]
    %v58 = vld [vmem:[#allocation6 + $0x10] sm:$0xf]
    %v59 = vld [vmem:[#allocation6 + $0x14] sm:$0xf]
    %v60 = vld [vmem:[#allocation6 + $0x18] sm:$0xf]
    %v61 = vld [vmem:[#allocation6 + $0x1c] sm:$0xf]
    %v62 = vld [vmem:[#allocation6 + $0x20] sm:$0xf]
    %v63 = vld [vmem:[#allocation6 + $0x24] sm:$0xf]
    %v64 = vld [vmem:[#allocation6 + $0x28] sm:$0xf]
    %v65 = vld [vmem:[#allocation6 + $0x2c] sm:$0xf]
    %v66 = vld [vmem:[#allocation6 + $0x30] sm:$0xf]
    %v67 = vld [vmem:[#allocation6 + $0x34] sm:$0xf]
    %v68 = vld [vmem:[#allocation6 + $0x38] sm:$0xf]
    %v69 = vld [vmem:[#allocation6 + $0x3c] sm:$0xf]
    %v72 = vunpack.c.l.b16 %v52
    %v73 = vunpack.c.l.b16 %v53
    %v74 = vpack.c.b16 %v73, %v72
    %v92 = vunpack.c.l.b16 %v54
    %v93 = vunpack.c.l.b16 %v55
    %v94 = vunpack.c.l.b16 %v56
    %v95 = vunpack.c.l.b16 %v57
    %v96 = vunpack.c.l.b16 %v58
    %v97 = vunpack.c.l.b16 %v59
    %v98 = vunpack.c.l.b16 %v60
    %v99 = vunpack.c.l.b16 %v61
    %v100 = vunpack.c.l.b16 %v62
    %v101 = vunpack.c.l.b16 %v63
    %v102 = vunpack.c.l.b16 %v64
    %v103 = vunpack.c.l.b16 %v65
    %v104 = vunpack.c.l.b16 %v66
    %v105 = vunpack.c.l.b16 %v67
    %v106 = vunpack.c.l.b16 %v68
    %v107 = vunpack.c.l.b16 %v69
    %v108 = vpack.c.b16 %v93, %v92
    %v109 = vpack.c.b16 %v95, %v94
    %v110 = vpack.c.b16 %v97, %v96
    %v111 = vpack.c.b16 %v99, %v98
    %v112 = vpack.c.b16 %v101, %v100
    %v113 = vpack.c.b16 %v103, %v102
    %v114 = vpack.c.b16 %v105, %v104
    %v115 = vpack.c.b16 %v107, %v106
    %124 = vmatprep.subr.bf16.mxu0 0
    %125 = vmatpush1.bf16.msra.mxu0 %v108
    %126 = vmatprep.subr.bf16.mxu0 0
    %127 = vmatpush1.bf16.msra.mxu0 %v109
    %128 = vmatprep.subr.bf16.mxu0 0
    %129 = vmatpush1.bf16.msra.mxu0 %v110
    %130 = vmatprep.subr.bf16.mxu0 0
    %131 = vmatpush1.bf16.msra.mxu0 %v111
    %132 = vmatprep.subr.bf16.mxu0 0
    %133 = vmatpush1.bf16.msra.mxu0 %v112
    %134 = vmatprep.subr.bf16.mxu0 0
    %135 = vmatpush1.bf16.msra.mxu0 %v113
    %136 = vmatprep.subr.bf16.mxu0 0
    %137 = vmatpush1.bf16.msra.mxu0 %v114
    %138 = vmatprep.subr.bf16.mxu0 0
    %139 = vmatpush1.bf16.msra.mxu0 %v115
    %140 = vmatprep.subr.bf16.mxu0 0
    %141 = vmatpush1.bf16.msra.mxu0 0
    %142 = vmatprep.subr.bf16.mxu0 0
    %143 = vmatpush1.bf16.msra.mxu0 0
    %144 = vmatprep.subr.bf16.mxu0 0
    %145 = vmatpush1.bf16.msra.mxu0 0
    %146 = vmatprep.subr.bf16.mxu0 0
    %147 = vmatpush1.bf16.msra.mxu0 0
    %148 = vmatprep.subr.bf16.mxu0 0
    %149 = vmatpush1.bf16.msra.mxu0 0
    %150 = vmatprep.subr.bf16.mxu0 0
    %151 = vmatpush1.bf16.msra.mxu0 0
    %152 = vmatprep.subr.bf16.mxu0 0
    %153 = vmatpush1.bf16.msra.mxu0 0
    %154 = vmatprep.subr.bf16.mxu0 0
    %155 = vmatpush1.bf16.msra.mxu0 0
    %156 = vmatprep.mubr.bf16.mxu0 0
    %157 = vmatmul.mubr.bf16.gmra.mrb[0].mxu0 %v74
    %v158 = vpop.f32.mrb[0].mxu0
    %v159 = vadd.f32 0.0, %v158
    %v160 = vpop.f32.mrb[0].mxu0
    %v161 = vpop.f32.mrb[0].mxu0
    %v162 = vadd.f32 0.0, %v161
    %v163 = vpop.f32.mrb[0].mxu0
    %164 = vdwg.mxu0
    %v165 = vadd.f32 %v50, %v159
    %v166 = vadd.f32 %v51, %v162
    %167 = vst [vmem:[#allocation2] sm:$0xff] %v165
    %168 = vst [vmem:[#allocation2 + $0x8] sm:$0xff] %v166
    // Predicated region
    $region26: #{tpu_custom_call.1} parent=1 // pred_check
      %p169 = pneg %p44
    $region27: #{tpu_custom_call.1} parent=1 // pred_check_branch
      %171 = sbr.rel (%p169) target = $region29
    $region28: #{tpu_custom_call.1} parent=1 // pred_region
      %v172 = vld [vmem:[#allocation2] sm:$0xff]
      %v173 = vld [vmem:[#allocation2 + $0x8] sm:$0xff]
      %v174 = vld [vmem:[%s2] sm:$0x1]
      %v176 = vlaneseq
      %v177 = vshrl.u32 %v176, 7
      %v178 = vsub.s32 0, %v177
      %v179 = vrot.slane %v174, %v178
      %v181 = vadd.f32 %v172, %v179
      %v182 = vadd.f32 %v173, %v179
      %183 = vst [vmem:[#allocation8] sm:$0xff] %v181
      %184 = vst [vmem:[#allocation8 + $0x8] sm:$0xff] %v182
    $region29: #{tpu_custom_call.1} parent=1 // pred_fallthru
      _
    // Predicated region
    $region30: #{tpu_custom_call.1} parent=1 // pred_check
      _
    $region31: #{tpu_custom_call.1} parent=1 // pred_check_branch
      %186 = sbr.rel (0) target = $region33
    $region32: #{tpu_custom_call.1} parent=1 // pred_region
      %s188 = ssub.s32 256, 256
      %189 = vsyncadd [#allocation5], %s188
      %s190 = sshll.u32 [#allocation8], 4
      %s191 = int_to_ptr.vmem [resolvable:$true] %s190
      %196 = dma.vmem_to_hbm [thread:$0]  %s191, 256, %s3, [#allocation5], 128, 128, 8
    $region33: #{tpu_custom_call.1} parent=1 // pred_fallthru
      _
    // Predicated region
    $region34: #{tpu_custom_call.1} parent=1 // pred_check
      _
    $region35: #{tpu_custom_call.1} parent=1 // pred_check_branch
      %198 = sbr.rel (0) target = $region37
    $region36: #{tpu_custom_call.1} parent=1 // pred_region
      %199 = dma.done [#allocation5], 256
    $region37: #{tpu_custom_call.1} parent=1 // pred_fallthru
      _
    %200 = vsyncpa [#allocation4], 1
    %201 = vsyncpa [#allocation7], 1
    %202 = vsyncpa [#allocation5], 1

</llo_original>
